<compile_context>
chip_gen: v7x
topology: tpu7x:2x2x1
jax: 0.10.0
libtpu: 0.0.40
codegen_flags: <defaults>
</compile_context>

<pallas_src>
import functools

import jax
import jax.numpy as jnp
from jax.experimental import pallas as pl
from jax.experimental.pallas import tpu as pltpu


def _simam_kernel(x_ref, o_ref, *, inv_n, e_lambda):
    """One (tile_rows, H*W) block; each row is one (batch, channel) plane.

    The block's last dim equals the full spatial extent, so Mosaic masks the
    (H*W % 128) pad lanes in the reductions/stores and drops out-of-bounds rows
    of the final partial block -- no explicit masking passes needed.
    """
    cols = x_ref.shape[-1]                       # static: full H*W
    xf = x_ref[...].astype(jnp.float32)          # single widening cast

    # Per-row mean and sum of squared deviations (f32, XLU lane reduces).
    mu = jnp.sum(xf, axis=-1, keepdims=True) * (1.0 / cols)
    d = xf - mu
    d2 = d * d
    s = jnp.sum(d2, axis=-1, keepdims=True)

    # (tile_rows, 1) column: approximate reciprocal runs on the EUP slot; one
    # Newton step restores f32 accuracy at negligible VPU cost.
    denom = 4.0 * (s * inv_n + e_lambda)
    inv = pl.reciprocal(denom, approx=True)
    inv = inv * (2.0 - denom * inv)

    y = d2 * inv + 0.5
    o_ref[...] = (xf * jax.nn.sigmoid(y)).astype(o_ref.dtype)


def _chip_params():
    """Per-generation tile / VMEM budgets.

    v5e / v6e: 128 MiB VMEM, 1 TC -> bigger blocks amortize the ~0.35us
    per-grid-step overhead.  v7x-class: 64 MiB VMEM, 2 TCs -> tighter blocks
    sized by live footprint, and >= 2 blocks per core for DMA overlap.
    """
    vmem = None
    try:
        vmem = getattr(pltpu.get_tpu_info(), "vmem_capacity_bytes", None)
    except Exception:
        vmem = None
    if vmem is None:
        try:
            kind = jax.devices()[0].device_kind.lower()
        except Exception:
            kind = ""
        vmem = (64 << 20) if "7" in kind else (128 << 20)
    if vmem >= (96 << 20):
        return dict(target_block_bytes=2 << 20, vmem_limit=64 << 20, min_grid=2)
    return dict(target_block_bytes=1 << 20, vmem_limit=48 << 20, min_grid=4)


def _choose_tile_rows(rows, cols, itemsize, target_block_bytes, min_grid):
    """Rows per block: ~target_block_bytes of input, sublane-aligned, and at
    least `min_grid` blocks whenever there is enough work."""
    granule = 16 if itemsize == 2 else 8           # native sublane packing
    rows_cap = ((rows + 7) // 8) * 8               # hard (8, .) block constraint
    row_bytes = max(1, cols * itemsize)
    tr = (target_block_bytes // row_bytes) // granule * granule
    tr = max(granule, tr)
    tr = min(tr, rows_cap)
    want = min(min_grid, max(1, rows_cap // 8))
    if pl.cdiv(rows, tr) < want:
        tr = ((pl.cdiv(rows, want) + 7) // 8) * 8
    return max(8, min(tr, rows_cap))


def _simam_ref(x, e_lambda=1e-4):
    """Pure-JAX reference mirroring the PyTorch forward (f32 math)."""
    xf = x.astype(jnp.float32)
    b, c, h, w = xf.shape
    n = w * h - 1
    mu = jnp.mean(xf, axis=(2, 3), keepdims=True)
    d2 = (xf - mu) ** 2
    y = d2 / (4.0 * (jnp.sum(d2, axis=(2, 3), keepdims=True) / n + e_lambda)) + 0.5
    return xf * jax.nn.sigmoid(y)


def simam(x, e_lambda=1e-4):
    """SimAM forward. x: (B, C, H, W), float dtype. Returns same shape/dtype."""
    b, c, h, w = x.shape
    n = h * w - 1
    inv_n = (1.0 / n) if n > 0 else float("inf")   # match torch's x/0 -> inf/nan

    rows = b * c
    cols = h * w
    dtype = x.dtype
    itemsize = jnp.dtype(dtype).itemsize

    params = _chip_params()
    tile_rows = _choose_tile_rows(rows, cols, itemsize,
                                  params["target_block_bytes"],
                                  params["min_grid"])
    grid_rows = pl.cdiv(rows, tile_rows)

    # Live-footprint estimate: double-buffered in + out blocks plus ~4 blocks
    # of f32 intermediates (xf, d, d2, y/out) the compiler may keep live.
    block_elems = tile_rows * cols
    est_vmem = 4 * block_elems * itemsize + 4 * block_elems * 4
    if est_vmem > params["vmem_limit"]:
        # TODO(synk): column-chunked two-pass kernel for very large H*W; fall
        # back to plain XLA so huge spatial extents still run correctly.
        return _simam_ref(x, e_lambda).astype(dtype)

    x2d = x.reshape(rows, cols)        # contiguous reshape: no HBM traffic
    kernel = functools.partial(_simam_kernel, inv_n=inv_n,
                               e_lambda=float(e_lambda))

    out2d = pl.pallas_call(
        kernel,
        out_shape=jax.ShapeDtypeStruct((rows, cols), dtype),
        grid_spec=pltpu.PrefetchScalarGridSpec(
            num_scalar_prefetch=0,
            grid=(grid_rows,),
            in_specs=[pl.BlockSpec((tile_rows, cols), lambda i: (i, 0))],
            out_specs=pl.BlockSpec((tile_rows, cols), lambda i: (i, 0)),
        ),
        compiler_params=pltpu.CompilerParams(
            dimension_semantics=("parallel",),
            vmem_limit_bytes=params["vmem_limit"],
        ),
    )(x2d)

    return out2d.reshape(b, c, h, w)


if __name__ == "__main__":
    key = jax.random.PRNGKey(0)

    # Required small case: B=2, C=4, H=W=16 (f32, lane-aligned, single block).
    x = jax.random.normal(key, (2, 4, 16, 16), dtype=jnp.float32)
    out = jax.block_until_ready(simam(x))
    assert out.shape == x.shape and out.dtype == x.dtype
    assert jnp.allclose(out, _simam_ref(x), atol=1e-4, rtol=1e-4)

    # Non-128-multiple spatial extent (14x14 = 196): full-cols block, Mosaic
    # masks the partial lane vreg -- no host-side padding.
    x2 = jax.random.normal(jax.random.PRNGKey(1), (2, 4, 14, 14), jnp.float32)
    out2 = jax.block_until_ready(simam(x2))
    assert jnp.allclose(out2, _simam_ref(x2), atol=1e-4, rtol=1e-4)

    # Row count not a tile multiple (B*C = 10): partial final row block, OOB
    # writes dropped -- no host-side padding or output slice.
    x3 = jax.random.normal(jax.random.PRNGKey(2), (2, 5, 16, 16), jnp.float32)
    out3 = jax.block_until_ready(simam(x3))
    assert jnp.allclose(out3, _simam_ref(x3), atol=1e-4, rtol=1e-4)

    # bf16 input: single widening cast, f32 math, single cast on store.
    xb = x.astype(jnp.bfloat16)
    outb = jax.block_until_ready(simam(xb))
    assert outb.dtype == jnp.bfloat16
    assert jnp.allclose(outb.astype(jnp.float32), _simam_ref(xb),
                        atol=2e-2, rtol=2e-2)

    print("KERNEL_OK")
</pallas_src>

<mosaic_0001>
module attributes {stable_mosaic.version = 11 : i64} {
  func.func @_simam_kernel(%arg0: i32, %arg1: memref<8x256xf32, #tpu.memory_space<vmem>>, %arg2: memref<8x256xf32, #tpu.memory_space<vmem>>) attributes {dimension_semantics = [#tpu.dimension_semantics<parallel>], iteration_bounds = array<i64: 1>, scalar_prefetch = 0 : i64, scratch_operands = 0 : i64, tpu.core_type = #tpu.core_type<tc>, window_params = [{transform_indices = @transform_0, window_bounds = array<i64: 8, 256>}, {transform_indices = @transform_1, window_bounds = array<i64: 8, 256>}]} {
    %c0 = arith.constant 0 : index
    %c0_0 = arith.constant 0 : index
    %0 = vector.load %arg1[%c0, %c0_0] : memref<8x256xf32, #tpu.memory_space<vmem>>, vector<8x256xf32>
    %cst = arith.constant dense<0.000000e+00> : vector<8xf32>
    %1 = vector.multi_reduction <add>, %0, %cst [1] : vector<8x256xf32> to vector<8xf32>
    %2 = vector.shape_cast %1 : vector<8xf32> to vector<8x1xf32>
    %cst_1 = arith.constant 3.906250e-03 : f32
    %3 = vector.broadcast %cst_1 : f32 to vector<8x1xf32>
    %4 = arith.mulf %2, %3 : vector<8x1xf32>
    %5 = vector.broadcast %4 : vector<8x1xf32> to vector<8x256xf32>
    %6 = arith.subf %0, %5 : vector<8x256xf32>
    %7 = arith.mulf %6, %6 : vector<8x256xf32>
    %cst_2 = arith.constant dense<0.000000e+00> : vector<8xf32>
    %8 = vector.multi_reduction <add>, %7, %cst_2 [1] : vector<8x256xf32> to vector<8xf32>
    %9 = vector.shape_cast %8 : vector<8xf32> to vector<8x1xf32>
    %cst_3 = arith.constant 0.00392156886 : f32
    %10 = vector.broadcast %cst_3 : f32 to vector<8x1xf32>
    %11 = arith.mulf %9, %10 : vector<8x1xf32>
    %cst_4 = arith.constant 9.99999974E-5 : f32
    %12 = vector.broadcast %cst_4 : f32 to vector<8x1xf32>
    %13 = arith.addf %11, %12 : vector<8x1xf32>
    %cst_5 = arith.constant 4.000000e+00 : f32
    %14 = vector.broadcast %cst_5 : f32 to vector<8x1xf32>
    %15 = arith.mulf %14, %13 : vector<8x1xf32>
    %16 = tpu.reciprocal %15 {approx = true} : vector<8x1xf32> -> vector<8x1xf32>
    %17 = arith.mulf %15, %16 : vector<8x1xf32>
    %cst_6 = arith.constant 2.000000e+00 : f32
    %18 = vector.broadcast %cst_6 : f32 to vector<8x1xf32>
    %19 = arith.subf %18, %17 : vector<8x1xf32>
    %20 = arith.mulf %16, %19 : vector<8x1xf32>
    %21 = vector.broadcast %20 : vector<8x1xf32> to vector<8x256xf32>
    %22 = arith.mulf %7, %21 : vector<8x256xf32>
    %cst_7 = arith.constant 5.000000e-01 : f32
    %23 = vector.broadcast %cst_7 : f32 to vector<8x256xf32>
    %24 = arith.addf %22, %23 : vector<8x256xf32>
    %25 = arith.negf %24 : vector<8x256xf32>
    %26 = math.exp %25 : vector<8x256xf32>
    %cst_8 = arith.constant 1.000000e+00 : f32
    %27 = vector.broadcast %cst_8 : f32 to vector<8x256xf32>
    %28 = arith.addf %27, %26 : vector<8x256xf32>
    %29 = arith.divf %27, %28 : vector<8x256xf32>
    %30 = arith.mulf %0, %29 : vector<8x256xf32>
    %c0_9 = arith.constant 0 : index
    %c0_10 = arith.constant 0 : index
    %31 = vector.load %arg2[%c0_9, %c0_10] : memref<8x256xf32, #tpu.memory_space<vmem>>, vector<8x256xf32>
    tpu.vector_store %arg2[%c0_9, %c0_10], %30 {strides = array<i32>} : memref<8x256xf32, #tpu.memory_space<vmem>>, vector<8x256xf32>,
    return
  }
  func.func @transform_0(%arg0: i32) -> (i32, i32) {
    %c0_i32 = arith.constant 0 : i32
    %c0_i32_0 = arith.constant 0 : i32
    return %arg0, %c0_i32 : i32, i32
  }
  func.func @transform_1(%arg0: i32) -> (i32, i32) {
    %c0_i32 = arith.constant 0 : i32
    %c0_i32_0 = arith.constant 0 : i32
    return %arg0, %c0_i32 : i32, i32
  }
}

</mosaic_0001>

<llo_original>
// kernel: tpu_custom_call.1
$region0: #{tpu_custom_call.1}
  #allocation0 [shape = 'u32[]', space=smem, size = 0x4, offset = 0x4, fixed_abs, tag = 'smem constant byte address 0x4 - core index']
  #allocation1 [shape = 'u32[144,128]{1,0:T(1,128)}', space=vmem, size = 0x12000, scoped, tag = 'internal scratch']
  %s0 = inlined_call_operand.hbm [shape: f32[8,256], index: 0, kind: input, shape index: {}]
  %s1 = inlined_call_operand.hbm [shape: f32[8,256], index: 1, kind: output, shape index: {}]
  %s2 = sld [smem:[#allocation0]]
  $region18: #{tpu_custom_call.1} parent=0
    _
  %s4 = ssub.s32 1, %s2
  %s5 = scalar_select 0, %s4, %s2
  $region1: #{tpu_custom_call.1} parent=0
    #allocation2 [shape = 'u8[8192]{0}', space=vmem, size = 0x2000, scoped, tag = 'input window, operand 0, single buffered']
    #allocation3 [shape = 's32[1]{0}', space=sflag, size = 0x4, scoped, tag = 'scoped memory for tpu_custom_call.1']
    #allocation4 [shape = 's32[1]{0}', space=sflag, size = 0x4, scoped, tag = 'scoped memory for tpu_custom_call.1']
    #allocation5 [shape = 'u8[8192]{0}', space=vmem, size = 0x2000, scoped, tag = 'output window, operand 0, single buffered']
    %6 = vsyncpa [#allocation3], 0
    %7 = vsyncpa [#allocation4], 0
    // Predicated region
    $region2: #{tpu_custom_call.1} parent=1 // pred_check
      _
    $region3: #{tpu_custom_call.1} parent=1 // pred_check_branch
      %9 = sbr.rel (0) target = $region5
    $region4: #{tpu_custom_call.1} parent=1 // pred_region
      %s11 = ssub.s32 256, 256
      %12 = vsyncadd [#allocation3], %s11
      %s14 = sshll.u32 [#allocation2], 4
      %s15 = int_to_ptr.vmem [resolvable:$true] %s14
      %17 = dma.hbm_to_vmem [thread:$0]  %s0, 256, %s15, [#allocation3]
    $region5: #{tpu_custom_call.1} parent=1 // pred_fallthru
      _
    // Predicated region
    $region6: #{tpu_custom_call.1} parent=1 // pred_check
      _
    $region7: #{tpu_custom_call.1} parent=1 // pred_check_branch
      %19 = sbr.rel (0) target = $region9
    $region8: #{tpu_custom_call.1} parent=1 // pred_region
      %20 = dma.done [#allocation3], 256
    $region9: #{tpu_custom_call.1} parent=1 // pred_fallthru
      _
    %v21 = vld [vmem:[#allocation2] sm:$0xff]
    %v22 = vld [vmem:[#allocation2 + $0x8] sm:$0xff]
    %v23 = vadd.f32 %v21, %v22
    %24 = vadd.xlane.f32.xlu0 %v23
    %v25 = vpop.xlane.xlu0 %24
    %v26 = vmul.f32 %v25, 0.00390625
    %v27 = vsub.f32 %v21, %v26
    %v28 = vsub.f32 %v22, %v26
    %v29 = vmul.f32 %v27, %v27
    %v30 = vmul.f32 %v28, %v28
    %v31 = vadd.f32 %v29, %v30
    %32 = vadd.xlane.f32.xlu0 %v31
    %v33 = vpop.xlane.xlu0 %32
    %v34 = vmul.f32 %v33, 0.003921569
    %v35 = vadd.f32 %v34, 0.0001
    %v36 = vmul.f32 %v35, 4.0
    %v37 = vrcp.pop %v36
    %v38 = vmul.f32 %v36, %v37
    %v39 = vsub.f32 2.0, %v38
    %v40 = vmul.f32 %v37, %v39
    %v41 = vmul.f32 %v29, %v40
    %v42 = vmul.f32 %v30, %v40
    %v43 = vadd.f32 %v41, 0.5
    %v44 = vadd.f32 %v42, 0.5
    %v45 = vxor.u32 %v43, 2147483648
    %v46 = vxor.u32 %v44, 2147483648
    %v47 = vmul.f32 %v45, 1.442695
    %v48 = vpow.pop %v47
    %v49 = vmul.f32 %v46, 1.442695
    %v50 = vpow.pop %v49
    %v51 = vadd.f32 %v48, 1.0
    %v52 = vadd.f32 %v50, 1.0
    %v53 = vrcp.pop %v51
    %v54 = vmul.f32 1.0, %v53
    %v55 = vrcp.pop %v52
    %v56 = vmul.f32 1.0, %v55
    %v57 = vmul.f32 %v21, %v54
    %v58 = vmul.f32 %v22, %v56
    %59 = vst [vmem:[#allocation5] sm:$0xff] %v57
    %60 = vst [vmem:[#allocation5 + $0x8] sm:$0xff] %v58
    // Predicated region
    $region10: #{tpu_custom_call.1} parent=1 // pred_check
      _
    $region11: #{tpu_custom_call.1} parent=1 // pred_check_branch
      %62 = sbr.rel (0) target = $region13
    $region12: #{tpu_custom_call.1} parent=1 // pred_region
      %s64 = ssub.s32 256, 256
      %65 = vsyncadd [#allocation4], %s64
      %s67 = sshll.u32 [#allocation5], 4
      %s68 = int_to_ptr.vmem [resolvable:$true] %s67
      %70 = dma.vmem_to_hbm [thread:$0]  %s68, 256, %s1, [#allocation4]
    $region13: #{tpu_custom_call.1} parent=1 // pred_fallthru
      _
    // Predicated region
    $region14: #{tpu_custom_call.1} parent=1 // pred_check
      _
    $region15: #{tpu_custom_call.1} parent=1 // pred_check_branch
      %72 = sbr.rel (0) target = $region17
    $region16: #{tpu_custom_call.1} parent=1 // pred_region
      %73 = dma.done [#allocation4], 256
    $region17: #{tpu_custom_call.1} parent=1 // pred_fallthru
      _
    %74 = vsyncpa [#allocation3], 1
    %75 = vsyncpa [#allocation4], 1

</llo_original>
